<compile_context>
chip_gen: v5e
topology: v5e:2x2
jax: 0.10.0
libtpu: 0.0.40
codegen_flags: <defaults>
</compile_context>

<pallas_src>
import jax
import jax.numpy as jnp
import numpy as np
from jax.experimental import pallas as pl
from jax.experimental.pallas import tpu as pltpu


# ----------------------------- Pallas kernel ------------------------------ #
def ffm_kernel(a_ref, b_ref, lin_ref, o_ref):
    # a_ref, b_ref : (R, TB)   bf16  packed pair operands (pairs*embed on sublanes,
    #                                 batch on lanes)
    # lin_ref      : (F+1, TB) f32   linear-term rows (last row = bias broadcast)
    # o_ref        : (1, TB)   f32   lane-dense sigmoid output
    a = a_ref[...].astype(jnp.float32)   # bf16 is only the HBM/DMA wire format;
    b = b_ref[...].astype(jnp.float32)   # compute in f32 (v5e has no bf16 VALU)

    prod = a * b                                        # one lane-dense VPU multiply
    ffm = jnp.sum(prod, axis=0, keepdims=True)          # sublane reduce -> (1, TB)
    lin = jnp.sum(lin_ref[...], axis=0, keepdims=True)  # linear term + bias -> (1, TB)

    o_ref[...] = jax.nn.sigmoid(ffm + lin)              # exp/recip on EUP


# ------------------------------ tile sizing -------------------------------- #
def _pick_batch_tile(B, R, n_lin_rows):
    """Pick a batch tile so double-buffered blocks stay well inside scoped VMEM."""
    per_elem = 2 * R * 2 + n_lin_rows * 4 + 4       # bytes per batch element per buffer
    if B < 128 or B % 128 != 0:
        return B                                    # small/ragged batch: single lane block
    budget = 8 * 1024 * 1024                        # per-buffer target (<= 32 MiB with 2x buffering)
    tb = max(128, min(B, (budget // per_elem) // 128 * 128))
    while B % tb:
        tb -= 128
    return tb


# ------------------------------ JAX wrapper -------------------------------- #
def ffm_model_forward(x, params, tb=None):
    """Forward pass of FieldAwareFactorizationMachineModel. x: (B, F) int32."""
    offsets = params["offsets"]          # (F,)   int32
    lin_w   = params["lin_weight"]       # (V, 1) f32
    lin_b   = params["lin_bias"]         # (1,)   f32
    emb_w   = params["ffm_weights"]      # (F, V, D) f32

    B, F = x.shape
    D = emb_w.shape[-1]

    idx = x + offsets[None, :]                                  # (B, F)

    # Static pair index tables (i < j).
    pi = np.asarray([i for i in range(F) for j in range(i + 1, F)], dtype=np.int32)
    pj = np.asarray([j for i in range(F) for j in range(i + 1, F)], dtype=np.int32)
    P = pi.shape[0]

    # Gather only the off-diagonal pair operands:
    #   a_g[p, b, :] = emb_w[j, idx[b, i]],  b_g[p, b, :] = emb_w[i, idx[b, j]]
    a_g = emb_w[pj[:, None], idx[:, pi].T]                      # (P, B, D)
    b_g = emb_w[pi[:, None], idx[:, pj].T]                      # (P, B, D)

    # Pack lane-dense: (pairs*embed, batch), batch on lanes, bf16 on the wire.
    # TODO(synk): store the embedding tables pre-transposed (F, D, V) so XLA emits
    # this layout straight out of the gather instead of a transpose fusion.
    a_pk = jnp.transpose(a_g, (0, 2, 1)).reshape(P * D, B).astype(jnp.bfloat16)
    b_pk = jnp.transpose(b_g, (0, 2, 1)).reshape(P * D, B).astype(jnp.bfloat16)

    R = P * D
    R_pad = -(-R // 16) * 16                                    # bf16 sublane packing
    if R_pad != R:
        a_pk = jnp.pad(a_pk, ((0, R_pad - R), (0, 0)))          # zero rows -> zero contribution
        b_pk = jnp.pad(b_pk, ((0, R_pad - R), (0, 0)))

    # Linear term rows (F, B) plus one bias row -> in-kernel row-sum covers both.
    lin_rows = lin_w[idx, 0].T.astype(jnp.float32)              # (F, B)
    bias_row = jnp.broadcast_to(lin_b.reshape(1, 1).astype(jnp.float32), (1, B))
    lin_pk = jnp.concatenate([lin_rows, bias_row], axis=0)      # (F+1, B)

    if tb is None:
        tb = _pick_batch_tile(B, R_pad, F + 1)
    assert B % tb == 0, f"batch {B} must be divisible by tile {tb}"

    out = pl.pallas_call(
        ffm_kernel,
        out_shape=jax.ShapeDtypeStruct((1, B), jnp.float32),
        grid=(B // tb,),
        in_specs=[
            pl.BlockSpec((R_pad, tb), lambda b: (0, b)),        # a_pk (bf16)
            pl.BlockSpec((R_pad, tb), lambda b: (0, b)),        # b_pk (bf16)
            pl.BlockSpec((F + 1, tb), lambda b: (0, b)),        # lin rows + bias (f32)
        ],
        out_specs=pl.BlockSpec((1, tb), lambda b: (0, b)),      # lane-dense output
        compiler_params=pltpu.CompilerParams(
            dimension_semantics=("parallel",),                  # shard batch across TCs (v7x)
            vmem_limit_bytes=32 * 1024 * 1024,                  # safe on v5e/v6e/v7x
        ),
    )(a_pk, b_pk, lin_pk)

    return out[0]                                               # (B,)


# --------------------------- parameter creation ---------------------------- #
def init_params(key, field_dims, embed_dim):
    F = len(field_dims)
    V = int(np.sum(field_dims))
    offsets = jnp.asarray(np.concatenate(([0], np.cumsum(field_dims)[:-1])),
                          dtype=jnp.int32)

    k_lin, k_ffm = jax.random.split(key)

    # xavier_uniform: bound = sqrt(6 / (fan_in + fan_out))
    b_lin = np.sqrt(6.0 / (V + 1))
    lin_weight = jax.random.uniform(k_lin, (V, 1), jnp.float32, -b_lin, b_lin)
    lin_bias = jnp.zeros((1,), jnp.float32)

    b_ffm = np.sqrt(6.0 / (V + embed_dim))
    ffm_weights = jax.random.uniform(k_ffm, (F, V, embed_dim), jnp.float32,
                                     -b_ffm, b_ffm)

    return {
        "offsets": offsets,
        "lin_weight": lin_weight,
        "lin_bias": lin_bias,
        "ffm_weights": ffm_weights,
    }


# -------------------------- pure JAX reference ----------------------------- #
def reference_forward(x, params):
    offsets = params["offsets"]
    lin_w = params["lin_weight"]
    lin_b = params["lin_bias"]
    emb_w = params["ffm_weights"]
    F = offsets.shape[0]

    idx = x + offsets[None, :]                             # (B, F)
    linear = jnp.sum(lin_w[idx, 0], axis=1) + lin_b[0]     # (B,)

    w_f = [emb_w[i][idx] for i in range(F)]                # each (B, F, D)
    vals = []
    for i in range(F - 1):
        for j in range(i + 1, F):
            vals.append(w_f[j][:, i] * w_f[i][:, j])
    ffm = jnp.stack(vals, axis=1)                          # (B, P, D)
    ffm_term = jnp.sum(jnp.sum(ffm, axis=1), axis=1)       # (B,)
    return jax.nn.sigmoid(linear + ffm_term)


# --------------------------------- main ------------------------------------ #
if __name__ == "__main__":
    key = jax.random.PRNGKey(0)
    field_dims = [8, 12, 16, 20]      # F = 4 fields, vocab = 56
    embed_dim = 32
    batch = 256                       # lane-dense tiles; tb=128 -> grid of 2 steps

    k_param, k_x = jax.random.split(key)
    params = init_params(k_param, field_dims, embed_dim)

    # categorical index input: x[b, f] in [0, field_dims[f])
    cols = []
    for f, fd in enumerate(field_dims):
        kf = jax.random.fold_in(k_x, f)
        cols.append(jax.random.randint(kf, (batch,), 0, fd, dtype=jnp.int32))
    x = jnp.stack(cols, axis=1)                            # (B, F) int32

    fwd = jax.jit(lambda xx: ffm_model_forward(xx, params, tb=128))
    out = jax.block_until_ready(fwd(x))
    ref = jax.block_until_ready(reference_forward(x, params))

    # Tolerance accounts for bf16 compression of the pair operands on the HBM side
    # (compute is f32 in-kernel); observed error is ~1e-3 post-sigmoid.
    np.testing.assert_allclose(np.asarray(out), np.asarray(ref),
                               rtol=2e-2, atol=2e-2)
    print("KERNEL_OK")
</pallas_src>

<mosaic_0001>
module attributes {stable_mosaic.version = 11 : i64} {
  func.func @ffm_kernel(%arg0: i32, %arg1: memref<192x128xbf16, #tpu.memory_space<vmem>>, %arg2: memref<192x128xbf16, #tpu.memory_space<vmem>>, %arg3: memref<5x128xf32, #tpu.memory_space<vmem>>, %arg4: memref<1x128xf32, #tpu.memory_space<vmem>>) attributes {dimension_semantics = [#tpu.dimension_semantics<parallel>], iteration_bounds = array<i64: 2>, scalar_prefetch = 0 : i64, scratch_operands = 0 : i64, tpu.core_type = #tpu.core_type<tc>, window_params = [{transform_indices = @transform_0, window_bounds = array<i64: 192, 128>}, {transform_indices = @transform_1, window_bounds = array<i64: 192, 128>}, {transform_indices = @transform_2, window_bounds = array<i64: 5, 128>}, {transform_indices = @transform_3, window_bounds = array<i64: 1, 128>}]} {
    %c0 = arith.constant 0 : index
    %c0_0 = arith.constant 0 : index
    %0 = vector.load %arg1[%c0, %c0_0] : memref<192x128xbf16, #tpu.memory_space<vmem>>, vector<192x128xbf16>
    %1 = arith.extf %0 : vector<192x128xbf16> to vector<192x128xf32>
    %c0_1 = arith.constant 0 : index
    %c0_2 = arith.constant 0 : index
    %2 = vector.load %arg2[%c0_1, %c0_2] : memref<192x128xbf16, #tpu.memory_space<vmem>>, vector<192x128xbf16>
    %3 = arith.extf %2 : vector<192x128xbf16> to vector<192x128xf32>
    %4 = arith.mulf %1, %3 : vector<192x128xf32>
    %cst = arith.constant dense<0.000000e+00> : vector<128xf32>
    %5 = vector.multi_reduction <add>, %4, %cst [0] : vector<192x128xf32> to vector<128xf32>
    %6 = vector.shape_cast %5 : vector<128xf32> to vector<1x128xf32>
    %c0_3 = arith.constant 0 : index
    %c0_4 = arith.constant 0 : index
    %7 = vector.load %arg3[%c0_3, %c0_4] : memref<5x128xf32, #tpu.memory_space<vmem>>, vector<5x128xf32>
    %cst_5 = arith.constant dense<0.000000e+00> : vector<128xf32>
    %8 = vector.multi_reduction <add>, %7, %cst_5 [0] : vector<5x128xf32> to vector<128xf32>
    %9 = vector.shape_cast %8 : vector<128xf32> to vector<1x128xf32>
    %10 = arith.addf %6, %9 : vector<1x128xf32>
    %11 = arith.negf %10 : vector<1x128xf32>
    %12 = math.exp %11 : vector<1x128xf32>
    %cst_6 = arith.constant 1.000000e+00 : f32
    %13 = vector.broadcast %cst_6 : f32 to vector<1x128xf32>
    %14 = arith.addf %13, %12 : vector<1x128xf32>
    %15 = arith.divf %13, %14 : vector<1x128xf32>
    %c0_7 = arith.constant 0 : index
    %c0_8 = arith.constant 0 : index
    %16 = vector.load %arg4[%c0_7, %c0_8] : memref<1x128xf32, #tpu.memory_space<vmem>>, vector<1x128xf32>
    tpu.vector_store %arg4[%c0_7, %c0_8], %15 {strides = array<i32>} : memref<1x128xf32, #tpu.memory_space<vmem>>, vector<1x128xf32>,
    return
  }
  func.func @transform_0(%arg0: i32) -> (i32, i32) {
    %c0_i32 = arith.constant 0 : i32
    %c0_i32_0 = arith.constant 0 : i32
    return %c0_i32, %arg0 : i32, i32
  }
  func.func @transform_1(%arg0: i32) -> (i32, i32) {
    %c0_i32 = arith.constant 0 : i32
    %c0_i32_0 = arith.constant 0 : i32
    return %c0_i32, %arg0 : i32, i32
  }
  func.func @transform_2(%arg0: i32) -> (i32, i32) {
    %c0_i32 = arith.constant 0 : i32
    %c0_i32_0 = arith.constant 0 : i32
    return %c0_i32, %arg0 : i32, i32
  }
  func.func @transform_3(%arg0: i32) -> (i32, i32) {
    %c0_i32 = arith.constant 0 : i32
    %c0_i32_0 = arith.constant 0 : i32
    return %c0_i32, %arg0 : i32, i32
  }
}

</mosaic_0001>

<llo_original>
// kernel: _lambda_.1
$region0: #{_lambda_.1}
  #allocation0 [shape = 'u32[]', space=smem, size = 0x4, offset = 0x4, fixed_abs, tag = 'smem constant byte address 0x4 - core index']
  #allocation1 [shape = 'u32[72,128]{1,0:T(1,128)}', space=vmem, size = 0x9000, scoped, tag = 'internal scratch']
  %s0 = inlined_call_operand.vmem [shape: bf16[192,256], index: 0, kind: input, shape index: {}]
  %s1 = inlined_call_operand.vmem [shape: bf16[192,256], index: 1, kind: input, shape index: {}]
  %s2 = inlined_call_operand.vmem [shape: f32[5,256], index: 2, kind: input, shape index: {}]
  %s3 = inlined_call_operand.hbm [shape: f32[1,256], index: 3, kind: output, shape index: {}]
  %s4 = sld [smem:[#allocation0]]
  $region127: #{_lambda_.1} parent=0
    _
  %s6 = ssub.s32 1, %s4
  %s7 = scalar_select 0, %s6, %s4
  $region1: #{_lambda_.1} parent=0
    #allocation2 [shape = 'u8[98304]{0}', space=vmem, size = 0x18000, scoped, tag = 'input window, operand 0']
    #allocation3 [shape = 'u8[98304]{0}', space=vmem, size = 0x18000, scoped, tag = 'input window, operand 1']
    #allocation4 [shape = 'u8[1024]{0}', space=vmem, size = 0x400, scoped, tag = 'output window, operand 0']
    #allocation5 [shape = 's32[2]{0}', space=sflag, size = 0x8, scoped, tag = 'scoped memory for _lambda_.1']
    %8 = vsyncpa [#allocation5], 0
    %s9 = scalar_lea.sflag [#allocation5], 1
    %10 = vsyncpa %s9, 0
    loop: start=0, step=1, limit=4
    $region2: #{_lambda_.1} parent=1 // loop_pre_header
      _
    $region3: #{_lambda_.1} parent=1 // loop_header
      %s12 = sphi 0, %s16
      %p13 = scmp.ge.s32.totalorder %s12, 4
      %s22 = sphi 0, %s24
      %s25 = sphi 0, %s22
      %s26 = sphi 0, %s25
      %s42 = sphi 0, %s26
      %s48 = sphi 0, %s50
      %s51 = sphi 0, %s48
      %s52 = sphi 0, %s51
      %s68 = sphi 0, %s52
      %s74 = sphi 0, %s76
      %s77 = sphi 0, %s74
      %s78 = sphi 0, %s77
      %s94 = sphi 0, %s78
      %s100 = sphi 0, %s102
      %s103 = sphi 0, %s100
      %s104 = sphi 0, %s103
      %s120 = sphi 0, %s104
    $region4: #{_lambda_.1} parent=1 // loop_header_branch
      %15 = sbr.rel (%p13) target = $region8
    $region5: #{_lambda_.1} parent=1 // loop_body
      %s17 = ssub.s32 %s12, 1
      %s18 = ssub.s32 %s12, 2
      %s19 = sadd.s32 %s12, 1
      %s20 = ssub.s32 %s12, %s19
      %p21 = scmp.eq.s32.totalorder %s20, 0
      %s23 = sadd.s32 %s22, 1
      %s24 = scalar_select %p21, %s22, %s23
      %p27 = pneg %p21
      %p28 = scmp.eq.s32.totalorder %s12, 1
      %p29 = por %p27, %p28
      %p30 = scmp.ne.s32.totalorder %s22, %s25
      %p31 = scmp.eq.s32.totalorder %s12, 0
      %p32 = por %p30, %p31
      %p33 = scmp.ne.s32.totalorder %s22, %s25
      %p34 = scmp.eq.s32.totalorder %s17, 1
      %p35 = por %p33, %p34
      %p36 = scmp.ne.s32.totalorder %s25, %s26
      %p37 = scmp.eq.s32.totalorder %s17, 0
      %p38 = por %p36, %p37
      %p39 = scmp.ne.s32.totalorder %s25, %s26
      %p40 = scmp.eq.s32.totalorder %s18, 1
      %p41 = por %p39, %p40
      %p43 = scmp.ne.s32.totalorder %s26, %s42
      %p44 = scmp.eq.s32.totalorder %s18, 0
      %p45 = por %p43, %p44
      %s46 = ssub.s32 %s12, %s19
      %p47 = scmp.eq.s32.totalorder %s46, 0
      %s49 = sadd.s32 %s48, 1
      %s50 = scalar_select %p47, %s48, %s49
      %p53 = pneg %p47
      %p54 = scmp.eq.s32.totalorder %s12, 1
      %p55 = por %p53, %p54
      %p56 = scmp.ne.s32.totalorder %s48, %s51
      %p57 = scmp.eq.s32.totalorder %s12, 0
      %p58 = por %p56, %p57
      %p59 = scmp.ne.s32.totalorder %s48, %s51
      %p60 = scmp.eq.s32.totalorder %s17, 1
      %p61 = por %p59, %p60
      %p62 = scmp.ne.s32.totalorder %s51, %s52
      %p63 = scmp.eq.s32.totalorder %s17, 0
      %p64 = por %p62, %p63
      %p65 = scmp.ne.s32.totalorder %s51, %s52
      %p66 = scmp.eq.s32.totalorder %s18, 1
      %p67 = por %p65, %p66
      %p69 = scmp.ne.s32.totalorder %s52, %s68
      %p70 = scmp.eq.s32.totalorder %s18, 0
      %p71 = por %p69, %p70
      %s72 = ssub.s32 %s12, %s19
      %p73 = scmp.eq.s32.totalorder %s72, 0
      %s75 = sadd.s32 %s74, 1
      %s76 = scalar_select %p73, %s74, %s75
      %p79 = pneg %p73
      %p80 = scmp.eq.s32.totalorder %s12, 1
      %p81 = por %p79, %p80
      %p82 = scmp.ne.s32.totalorder %s74, %s77
      %p83 = scmp.eq.s32.totalorder %s12, 0
      %p84 = por %p82, %p83
      %p85 = scmp.ne.s32.totalorder %s74, %s77
      %p86 = scmp.eq.s32.totalorder %s17, 1
      %p87 = por %p85, %p86
      %p88 = scmp.ne.s32.totalorder %s77, %s78
      %p89 = scmp.eq.s32.totalorder %s17, 0
      %p90 = por %p88, %p89
      %p91 = scmp.ne.s32.totalorder %s77, %s78
      %p92 = scmp.eq.s32.totalorder %s18, 1
      %p93 = por %p91, %p92
      %p95 = scmp.ne.s32.totalorder %s78, %s94
      %p96 = scmp.eq.s32.totalorder %s18, 0
      %p97 = por %p95, %p96
      %s98 = ssub.s32 %s12, %s19
      %p99 = scmp.eq.s32.totalorder %s98, 0
      %s101 = sadd.s32 %s100, 1
      %s102 = scalar_select %p99, %s100, %s101
      %p105 = pneg %p99
      %p106 = scmp.eq.s32.totalorder %s12, 1
      %p107 = por %p105, %p106
      %p108 = scmp.ne.s32.totalorder %s100, %s103
      %p109 = scmp.eq.s32.totalorder %s12, 0
      %p110 = por %p108, %p109
      %p111 = scmp.ne.s32.totalorder %s100, %s103
      %p112 = scmp.eq.s32.totalorder %s17, 1
      %p113 = por %p111, %p112
      %p114 = scmp.ne.s32.totalorder %s103, %s104
      %p115 = scmp.eq.s32.totalorder %s17, 0
      %p116 = por %p114, %p115
      %p117 = scmp.ne.s32.totalorder %s103, %s104
      %p118 = scmp.eq.s32.totalorder %s18, 1
      %p119 = por %p117, %p118
      %p121 = scmp.ne.s32.totalorder %s104, %s120
      %p122 = scmp.eq.s32.totalorder %s18, 0
      %p123 = por %p121, %p122
      %p124 = scmp.le.s32.totalorder 1, %s12
      %p125 = scmp.lt.s32.totalorder %s12, 3
      %p126 = pnand %p124, %p125
      %p127 = pneg %p126
      // Predicated region
      $region9: #{_lambda_.1} parent=5 // pred_check
        _
      $region10: #{_lambda_.1} parent=5 // pred_check_branch
        %129 = sbr.rel (%p126) target = $region12
      $region11: #{_lambda_.1} parent=5 // pred_region
        %s130 = ssub.s32 %s12, 1
      $region12: #{_lambda_.1} parent=5 // pred_fallthru
        _
      %p131 = scmp.lt.s32.totalorder %s12, 2
      // Predicated region
      $region13: #{_lambda_.1} parent=5 // pred_check
        %p132 = pneg %p131
      $region14: #{_lambda_.1} parent=5 // pred_check_branch
        %134 = sbr.rel (%p132) target = $region16
      $region15: #{_lambda_.1} parent=5 // pred_region
        // Predicated region
        $region17: #{_lambda_.1} parent=15 // pred_check
          %p135 = pneg %p32
        $region18: #{_lambda_.1} parent=15 // pred_check_branch
          %137 = sbr.rel (%p135) target = $region20
        $region19: #{_lambda_.1} parent=15 // pred_region
          %s138 = sand.u32 %s22, 1
          %s139 = sand.u32 %s22, 1
          %s140 = smul.addr %s139, 96
          %s141 = scalar_lea.vmem [#allocation2], %s140
          %s142 = smul.addr %s12, 4
          %s143 = scalar_lea.vmem %s0, %s142
          // Predicated region
          $region21: #{_lambda_.1} parent=19 // pred_check
            _
          $region22: #{_lambda_.1} parent=19 // pred_check_branch
            %145 = sbr.rel (0) target = $region24
          $region23: #{_lambda_.1} parent=19 // pred_region
            // Predicated region
            $region25: #{_lambda_.1} parent=23 // pred_check
              _
            $region26: #{_lambda_.1} parent=23 // pred_check_branch
              %147 = sbr.rel target = $region28
            $region27: #{_lambda_.1} parent=23 // pred_region
              // Predicated region
              $region40: #{_lambda_.1} parent=27 // pred_check
                _
              $region41: #{_lambda_.1} parent=27 // pred_check_branch
                %209 = sbr.rel (0) target = $region43
              $region42: #{_lambda_.1} parent=27 // pred_region
                loop: start=0, step=1, limit=1
                $region44: #{_lambda_.1} parent=42 // loop_pre_header
                  _
                $region45: #{_lambda_.1} parent=42 // loop_header
                  %s211 = sphi 0, %s215
                  %p212 = scmp.ge.s32.totalorder %s211, 1
                  %s216 = sphi %s143, %s143
                  %s217 = sphi %s141, %s141
                $region46: #{_lambda_.1} parent=42 // loop_header_branch
                  %214 = sbr.rel (%p212) target = $region50
                $region47: #{_lambda_.1} parent=42 // loop_body
                  _
                $region48: #{_lambda_.1} parent=42 // loop_footer
                  %s215 = sadd.s32 1, %s211
                $region49: #{_lambda_.1} parent=42 // loop_footer_branch
                  %210 = sbr.rel target = $region45
                $region50: #{_lambda_.1} parent=42 // loop_exit
                  _
                %s219 = ssub.s32 16, 1
                loop: start=0, step=1, limit=1
                $region51: #{_lambda_.1} parent=42 // loop_pre_header
                  _
                $region52: #{_lambda_.1} parent=42 // loop_header
                  %s221 = sphi 0, %s225
                  %p222 = scmp.ge.s32.totalorder %s221, 1
                  %s226 = sphi %s143, %s143
                  %s227 = sphi %s141, %s141
                $region53: #{_lambda_.1} parent=42 // loop_header_branch
                  %224 = sbr.rel (%p222) target = $region57
                $region54: #{_lambda_.1} parent=42 // loop_body
                  %v228 = vld [vmem:[%s226] sm:%s219]
                  %229 = vst [vmem:[%s227] sm:%s219] %v228
                  %v230 = vld [vmem:[%s226 + $0x8] sm:%s219]
                  %231 = vst [vmem:[%s227 + $0x4] sm:%s219] %v230
                  %v232 = vld [vmem:[%s226 + $0x10] sm:%s219]
                  %233 = vst [vmem:[%s227 + $0x8] sm:%s219] %v232
                  %v234 = vld [vmem:[%s226 + $0x18] sm:%s219]
                  %235 = vst [vmem:[%s227 + $0xc] sm:%s219] %v234
                  %v236 = vld [vmem:[%s226 + $0x20] sm:%s219]
                  %237 = vst [vmem:[%s227 + $0x10] sm:%s219] %v236
                  %v238 = vld [vmem:[%s226 + $0x28] sm:%s219]
                  %239 = vst [vmem:[%s227 + $0x14] sm:%s219] %v238
                  %v240 = vld [vmem:[%s226 + $0x30] sm:%s219]
                  %241 = vst [vmem:[%s227 + $0x18] sm:%s219] %v240
                  %v242 = vld [vmem:[%s226 + $0x38] sm:%s219]
                  %243 = vst [vmem:[%s227 + $0x1c] sm:%s219] %v242
                  %v244 = vld [vmem:[%s226 + $0x40] sm:%s219]
                  %245 = vst [vmem:[%s227 + $0x20] sm:%s219] %v244
                  %v246 = vld [vmem:[%s226 + $0x48] sm:%s219]
                  %247 = vst [vmem:[%s227 + $0x24] sm:%s219] %v246
                  %v248 = vld [vmem:[%s226 + $0x50] sm:%s219]
                  %249 = vst [vmem:[%s227 + $0x28] sm:%s219] %v248
                  %v250 = vld [vmem:[%s226 + $0x58] sm:%s219]
                  %251 = vst [vmem:[%s227 + $0x2c] sm:%s219] %v250
                  %v252 = vld [vmem:[%s226 + $0x60] sm:%s219]
                  %253 = vst [vmem:[%s227 + $0x30] sm:%s219] %v252
                  %v254 = vld [vmem:[%s226 + $0x68] sm:%s219]
                  %255 = vst [vmem:[%s227 + $0x34] sm:%s219] %v254
                  %v256 = vld [vmem:[%s226 + $0x70] sm:%s219]
                  %257 = vst [vmem:[%s227 + $0x38] sm:%s219] %v256
                  %v258 = vld [vmem:[%s226 + $0x78] sm:%s219]
                  %259 = vst [vmem:[%s227 + $0x3c] sm:%s219] %v258
                  %v260 = vld [vmem:[%s226 + $0x80] sm:%s219]
                  %261 = vst [vmem:[%s227 + $0x40] sm:%s219] %v260
                  %v262 = vld [vmem:[%s226 + $0x88] sm:%s219]
                  %263 = vst [vmem:[%s227 + $0x44] sm:%s219] %v262
                  %v264 = vld [vmem:[%s226 + $0x90] sm:%s219]
                  %265 = vst [vmem:[%s227 + $0x48] sm:%s219] %v264
                  %v266 = vld [vmem:[%s226 + $0x98] sm:%s219]
                  %267 = vst [vmem:[%s227 + $0x4c] sm:%s219] %v266
                  %v268 = vld [vmem:[%s226 + $0xa0] sm:%s219]
                  %269 = vst [vmem:[%s227 + $0x50] sm:%s219] %v268
                  %v270 = vld [vmem:[%s226 + $0xa8] sm:%s219]
                  %271 = vst [vmem:[%s227 + $0x54] sm:%s219] %v270
                  %v272 = vld [vmem:[%s226 + $0xb0] sm:%s219]
                  %273 = vst [vmem:[%s227 + $0x58] sm:%s219] %v272
                  %v274 = vld [vmem:[%s226 + $0xb8] sm:%s219]
                  %275 = vst [vmem:[%s227 + $0x5c] sm:%s219] %v274
                $region55: #{_lambda_.1} parent=42 // loop_footer
                  %s225 = sadd.s32 1, %s221
                $region56: #{_lambda_.1} parent=42 // loop_footer_branch
                  %220 = sbr.rel target = $region52
                $region57: #{_lambda_.1} parent=42 // loop_exit
                  _
              $region43: #{_lambda_.1} parent=27 // pred_fallthru
                _
            $region28: #{_lambda_.1} parent=23 // pred_fallthru
              _
            // Predicated region
            $region29: #{_lambda_.1} parent=23 // pred_check
              _
            $region30: #{_lambda_.1} parent=23 // pred_check_branch
              %149 = sbr.rel (0) target = $region32
            $region31: #{_lambda_.1} parent=23 // pred_region
              %s151 = ssub.s32 16, 1
              loop: start=0, step=1, limit=1
              $region33: #{_lambda_.1} parent=31 // loop_pre_header
                _
              $region34: #{_lambda_.1} parent=31 // loop_header
                %s153 = sphi 0, %s157
                %p154 = scmp.ge.s32.totalorder %s153, 1
                %s158 = sphi %s143, %s143
                %s159 = sphi %s141, %s141
              $region35: #{_lambda_.1} parent=31 // loop_header_branch
                %156 = sbr.rel (%p154) target = $region39
              $region36: #{_lambda_.1} parent=31 // loop_body
                %v160 = vld [vmem:[%s158] sm:%s151]
                %161 = vst [vmem:[%s159] sm:%s151] %v160
                %v162 = vld [vmem:[%s158 + $0x8] sm:%s151]
                %163 = vst [vmem:[%s159 + $0x4] sm:%s151] %v162
                %v164 = vld [vmem:[%s158 + $0x10] sm:%s151]
                %165 = vst [vmem:[%s159 + $0x8] sm:%s151] %v164
                %v166 = vld [vmem:[%s158 + $0x18] sm:%s151]
                %167 = vst [vmem:[%s159 + $0xc] sm:%s151] %v166
                %v168 = vld [vmem:[%s158 + $0x20] sm:%s151]
                %169 = vst [vmem:[%s159 + $0x10] sm:%s151] %v168
                %v170 = vld [vmem:[%s158 + $0x28] sm:%s151]
                %171 = vst [vmem:[%s159 + $0x14] sm:%s151] %v170
                %v172 = vld [vmem:[%s158 + $0x30] sm:%s151]
                %173 = vst [vmem:[%s159 + $0x18] sm:%s151] %v172
                %v174 = vld [vmem:[%s158 + $0x38] sm:%s151]
                %175 = vst [vmem:[%s159 + $0x1c] sm:%s151] %v174
                %v176 = vld [vmem:[%s158 + $0x40] sm:%s151]
                %177 = vst [vmem:[%s159 + $0x20] sm:%s151] %v176
                %v178 = vld [vmem:[%s158 + $0x48] sm:%s151]
                %179 = vst [vmem:[%s159 + $0x24] sm:%s151] %v178
                %v180 = vld [vmem:[%s158 + $0x50] sm:%s151]
                %181 = vst [vmem:[%s159 + $0x28] sm:%s151] %v180
                %v182 = vld [vmem:[%s158 + $0x58] sm:%s151]
                %183 = vst [vmem:[%s159 + $0x2c] sm:%s151] %v182
                %v184 = vld [vmem:[%s158 + $0x60] sm:%s151]
                %185 = vst [vmem:[%s159 + $0x30] sm:%s151] %v184
                %v186 = vld [vmem:[%s158 + $0x68] sm:%s151]
                %187 = vst [vmem:[%s159 + $0x34] sm:%s151] %v186
                %v188 = vld [vmem:[%s158 + $0x70] sm:%s151]
                %189 = vst [vmem:[%s159 + $0x38] sm:%s151] %v188
                %v190 = vld [vmem:[%s158 + $0x78] sm:%s151]
                %191 = vst [vmem:[%s159 + $0x3c] sm:%s151] %v190
                %v192 = vld [vmem:[%s158 + $0x80] sm:%s151]
                %193 = vst [vmem:[%s159 + $0x40] sm:%s151] %v192
                %v194 = vld [vmem:[%s158 + $0x88] sm:%s151]
                %195 = vst [vmem:[%s159 + $0x44] sm:%s151] %v194
                %v196 = vld [vmem:[%s158 + $0x90] sm:%s151]
                %197 = vst [vmem:[%s159 + $0x48] sm:%s151] %v196
                %v198 = vld [vmem:[%s158 + $0x98] sm:%s151]
                %199 = vst [vmem:[%s159 + $0x4c] sm:%s151] %v198
                %v200 = vld [vmem:[%s158 + $0xa0] sm:%s151]
                %201 = vst [vmem:[%s159 + $0x50] sm:%s151] %v200
                %v202 = vld [vmem:[%s158 + $0xa8] sm:%s151]
                %203 = vst [vmem:[%s159 + $0x54] sm:%s151] %v202
                %v204 = vld [vmem:[%s158 + $0xb0] sm:%s151]
                %205 = vst [vmem:[%s159 + $0x58] sm:%s151] %v204
                %v206 = vld [vmem:[%s158 + $0xb8] sm:%s151]
                %207 = vst [vmem:[%s159 + $0x5c] sm:%s151] %v206
              $region37: #{_lambda_.1} parent=31 // loop_footer
                %s157 = sadd.s32 1, %s153
              $region38: #{_lambda_.1} parent=31 // loop_footer_branch
                %152 = sbr.rel target = $region34
              $region39: #{_lambda_.1} parent=31 // loop_exit
                _
            $region32: #{_lambda_.1} parent=23 // pred_fallthru
              _
          $region24: #{_lambda_.1} parent=19 // pred_fallthru
            _
          %276 = vnop
        $region20: #{_lambda_.1} parent=15 // pred_fallthru
          _
        // Predicated region
        $region58: #{_lambda_.1} parent=15 // pred_check
          %p277 = pneg %p58
        $region59: #{_lambda_.1} parent=15 // pred_check_branch
          %279 = sbr.rel (%p277) target = $region61
        $region60: #{_lambda_.1} parent=15 // pred_region
          %s280 = sand.u32 %s48, 1
          %s281 = sand.u32 %s48, 1
          %s282 = smul.addr %s281, 96
          %s283 = scalar_lea.vmem [#allocation3], %s282
          %s284 = smul.addr %s12, 4
          %s285 = scalar_lea.vmem %s1, %s284
          // Predicated region
          $region62: #{_lambda_.1} parent=60 // pred_check
            _
          $region63: #{_lambda_.1} parent=60 // pred_check_branch
            %287 = sbr.rel (0) target = $region65
          $region64: #{_lambda_.1} parent=60 // pred_region
            // Predicated region
            $region66: #{_lambda_.1} parent=64 // pred_check
              _
            $region67: #{_lambda_.1} parent=64 // pred_check_branch
              %289 = sbr.rel target = $region69
            $region68: #{_lambda_.1} parent=64 // pred_region
              // Predicated region
              $region81: #{_lambda_.1} parent=68 // pred_check
                _
              $region82: #{_lambda_.1} parent=68 // pred_check_branch
                %351 = sbr.rel (0) target = $region84
              $region83: #{_lambda_.1} parent=68 // pred_region
                loop: start=0, step=1, limit=1
                $region85: #{_lambda_.1} parent=83 // loop_pre_header
                  _
                $region86: #{_lambda_.1} parent=83 // loop_header
                  %s353 = sphi 0, %s357
                  %p354 = scmp.ge.s32.totalorder %s353, 1
                  %s358 = sphi %s285, %s285
                  %s359 = sphi %s283, %s283
                $region87: #{_lambda_.1} parent=83 // loop_header_branch
                  %356 = sbr.rel (%p354) target = $region91
                $region88: #{_lambda_.1} parent=83 // loop_body
                  _
                $region89: #{_lambda_.1} parent=83 // loop_footer
                  %s357 = sadd.s32 1, %s353
                $region90: #{_lambda_.1} parent=83 // loop_footer_branch
                  %352 = sbr.rel target = $region86
                $region91: #{_lambda_.1} parent=83 // loop_exit
                  _
                %s361 = ssub.s32 16, 1
                loop: start=0, step=1, limit=1
                $region92: #{_lambda_.1} parent=83 // loop_pre_header
                  _
                $region93: #{_lambda_.1} parent=83 // loop_header
                  %s363 = sphi 0, %s367
                  %p364 = scmp.ge.s32.totalorder %s363, 1
                  %s368 = sphi %s285, %s285
                  %s369 = sphi %s283, %s283
                $region94: #{_lambda_.1} parent=83 // loop_header_branch
                  %366 = sbr.rel (%p364) target = $region98
                $region95: #{_lambda_.1} parent=83 // loop_body
                  %v370 = vld [vmem:[%s368] sm:%s361]
                  %371 = vst [vmem:[%s369] sm:%s361] %v370
                  %v372 = vld [vmem:[%s368 + $0x8] sm:%s361]
                  %373 = vst [vmem:[%s369 + $0x4] sm:%s361] %v372
                  %v374 = vld [vmem:[%s368 + $0x10] sm:%s361]
                  %375 = vst [vmem:[%s369 + $0x8] sm:%s361] %v374
                  %v376 = vld [vmem:[%s368 + $0x18] sm:%s361]
                  %377 = vst [vmem:[%s369 + $0xc] sm:%s361] %v376
                  %v378 = vld [vmem:[%s368 + $0x20] sm:%s361]
                  %379 = vst [vmem:[%s369 + $0x10] sm:%s361] %v378
                  %v380 = vld [vmem:[%s368 + $0x28] sm:%s361]
                  %381 = vst [vmem:[%s369 + $0x14] sm:%s361] %v380
                  %v382 = vld [vmem:[%s368 + $0x30] sm:%s361]
                  %383 = vst [vmem:[%s369 + $0x18] sm:%s361] %v382
                  %v384 = vld [vmem:[%s368 + $0x38] sm:%s361]
                  %385 = vst [vmem:[%s369 + $0x1c] sm:%s361] %v384
                  %v386 = vld [vmem:[%s368 + $0x40] sm:%s361]
                  %387 = vst [vmem:[%s369 + $0x20] sm:%s361] %v386
                  %v388 = vld [vmem:[%s368 + $0x48] sm:%s361]
                  %389 = vst [vmem:[%s369 + $0x24] sm:%s361] %v388
                  %v390 = vld [vmem:[%s368 + $0x50] sm:%s361]
                  %391 = vst [vmem:[%s369 + $0x28] sm:%s361] %v390
                  %v392 = vld [vmem:[%s368 + $0x58] sm:%s361]
                  %393 = vst [vmem:[%s369 + $0x2c] sm:%s361] %v392
                  %v394 = vld [vmem:[%s368 + $0x60] sm:%s361]
                  %395 = vst [vmem:[%s369 + $0x30] sm:%s361] %v394
                  %v396 = vld [vmem:[%s368 + $0x68] sm:%s361]
                  %397 = vst [vmem:[%s369 + $0x34] sm:%s361] %v396
                  %v398 = vld [vmem:[%s368 + $0x70] sm:%s361]
                  %399 = vst [vmem:[%s369 + $0x38] sm:%s361] %v398
                  %v400 = vld [vmem:[%s368 + $0x78] sm:%s361]
                  %401 = vst [vmem:[%s369 + $0x3c] sm:%s361] %v400
                  %v402 = vld [vmem:[%s368 + $0x80] sm:%s361]
                  %403 = vst [vmem:[%s369 + $0x40] sm:%s361] %v402
                  %v404 = vld [vmem:[%s368 + $0x88] sm:%s361]
                  %405 = vst [vmem:[%s369 + $0x44] sm:%s361] %v404
                  %v406 = vld [vmem:[%s368 + $0x90] sm:%s361]
                  %407 = vst [vmem:[%s369 + $0x48] sm:%s361] %v406
                  %v408 = vld [vmem:[%s368 + $0x98] sm:%s361]
                  %409 = vst [vmem:[%s369 + $0x4c] sm:%s361] %v408
                  %v410 = vld [vmem:[%s368 + $0xa0] sm:%s361]
                  %411 = vst [vmem:[%s369 + $0x50] sm:%s361] %v410
                  %v412 = vld [vmem:[%s368 + $0xa8] sm:%s361]
                  %413 = vst [vmem:[%s369 + $0x54] sm:%s361] %v412
                  %v414 = vld [vmem:[%s368 + $0xb0] sm:%s361]
                  %415 = vst [vmem:[%s369 + $0x58] sm:%s361] %v414
                  %v416 = vld [vmem:[%s368 + $0xb8] sm:%s361]
                  %417 = vst [vmem:[%s369 + $0x5c] sm:%s361] %v416
                $region96: #{_lambda_.1} parent=83 // loop_footer
                  %s367 = sadd.s32 1, %s363
                $region97: #{_lambda_.1} parent=83 // loop_footer_branch
                  %362 = sbr.rel target = $region93
                $region98: #{_lambda_.1} parent=83 // loop_exit
                  _
              $region84: #{_lambda_.1} parent=68 // pred_fallthru
                _
            $region69: #{_lambda_.1} parent=64 // pred_fallthru
              _
            // Predicated region
            $region70: #{_lambda_.1} parent=64 // pred_check
              _
            $region71: #{_lambda_.1} parent=64 // pred_check_branch
              %291 = sbr.rel (0) target = $region73
            $region72: #{_lambda_.1} parent=64 // pred_region
              %s293 = ssub.s32 16, 1
              loop: start=0, step=1, limit=1
              $region74: #{_lambda_.1} parent=72 // loop_pre_header
                _
              $region75: #{_lambda_.1} parent=72 // loop_header
                %s295 = sphi 0, %s299
                %p296 = scmp.ge.s32.totalorder %s295, 1
                %s300 = sphi %s285, %s285
                %s301 = sphi %s283, %s283
              $region76: #{_lambda_.1} parent=72 // loop_header_branch
                %298 = sbr.rel (%p296) target = $region80
              $region77: #{_lambda_.1} parent=72 // loop_body
                %v302 = vld [vmem:[%s300] sm:%s293]
                %303 = vst [vmem:[%s301] sm:%s293] %v302
                %v304 = vld [vmem:[%s300 + $0x8] sm:%s293]
                %305 = vst [vmem:[%s301 + $0x4] sm:%s293] %v304
                %v306 = vld [vmem:[%s300 + $0x10] sm:%s293]
                %307 = vst [vmem:[%s301 + $0x8] sm:%s293] %v306
                %v308 = vld [vmem:[%s300 + $0x18] sm:%s293]
                %309 = vst [vmem:[%s301 + $0xc] sm:%s293] %v308
                %v310 = vld [vmem:[%s300 + $0x20] sm:%s293]
                %311 = vst [vmem:[%s301 + $0x10] sm:%s293] %v310
                %v312 = vld [vmem:[%s300 + $0x28] sm:%s293]
                %313 = vst [vmem:[%s301 + $0x14] sm:%s293] %v312
                %v314 = vld [vmem:[%s300 + $0x30] sm:%s293]
                %315 = vst [vmem:[%s301 + $0x18] sm:%s293] %v314
                %v316 = vld [vmem:[%s300 + $0x38] sm:%s293]
                %317 = vst [vmem:[%s301 + $0x1c] sm:%s293] %v316
                %v318 = vld [vmem:[%s300 + $0x40] sm:%s293]
                %319 = vst [vmem:[%s301 + $0x20] sm:%s293] %v318
                %v320 = vld [vmem:[%s300 + $0x48] sm:%s293]
                %321 = vst [vmem:[%s301 + $0x24] sm:%s293] %v320
                %v322 = vld [vmem:[%s300 + $0x50] sm:%s293]
                %323 = vst [vmem:[%s301 + $0x28] sm:%s293] %v322
                %v324 = vld [vmem:[%s300 + $0x58] sm:%s293]
                %325 = vst [vmem:[%s301 + $0x2c] sm:%s293] %v324
                %v326 = vld [vmem:[%s300 + $0x60] sm:%s293]
                %327 = vst [vmem:[%s301 + $0x30] sm:%s293] %v326
                %v328 = vld [vmem:[%s300 + $0x68] sm:%s293]
                %329 = vst [vmem:[%s301 + $0x34] sm:%s293] %v328
                %v330 = vld [vmem:[%s300 + $0x70] sm:%s293]
                %331 = vst [vmem:[%s301 + $0x38] sm:%s293] %v330
                %v332 = vld [vmem:[%s300 + $0x78] sm:%s293]
                %333 = vst [vmem:[%s301 + $0x3c] sm:%s293] %v332
                %v334 = vld [vmem:[%s300 + $0x80] sm:%s293]
                %335 = vst [vmem:[%s301 + $0x40] sm:%s293] %v334
                %v336 = vld [vmem:[%s300 + $0x88] sm:%s293]
                %337 = vst [vmem:[%s301 + $0x44] sm:%s293] %v336
                %v338 = vld [vmem:[%s300 + $0x90] sm:%s293]
                %339 = vst [vmem:[%s301 + $0x48] sm:%s293] %v338
                %v340 = vld [vmem:[%s300 + $0x98] sm:%s293]
                %341 = vst [vmem:[%s301 + $0x4c] sm:%s293] %v340
                %v342 = vld [vmem:[%s300 + $0xa0] sm:%s293]
                %343 = vst [vmem:[%s301 + $0x50] sm:%s293] %v342
                %v344 = vld [vmem:[%s300 + $0xa8] sm:%s293]
                %345 = vst [vmem:[%s301 + $0x54] sm:%s293] %v344
                %v346 = vld [vmem:[%s300 + $0xb0] sm:%s293]
                %347 = vst [vmem:[%s301 + $0x58] sm:%s293] %v346
                %v348 = vld [vmem:[%s300 + $0xb8] sm:%s293]
                %349 = vst [vmem:[%s301 + $0x5c] sm:%s293] %v348
              $region78: #{_lambda_.1} parent=72 // loop_footer
                %s299 = sadd.s32 1, %s295
              $region79: #{_lambda_.1} parent=72 // loop_footer_branch
                %294 = sbr.rel target = $region75
              $region80: #{_lambda_.1} parent=72 // loop_exit
                _
            $region73: #{_lambda_.1} parent=64 // pred_fallthru
              _
          $region65: #{_lambda_.1} parent=60 // pred_fallthru
            _
          %418 = vnop
        $region61: #{_lambda_.1} parent=15 // pred_fallthru
          _
        // Predicated region
        $region99: #{_lambda_.1} parent=15 // pred_check
          %p419 = pneg %p84
        $region100: #{_lambda_.1} parent=15 // pred_check_branch
          %421 = sbr.rel (%p419) target = $region102
        $region101: #{_lambda_.1} parent=15 // pred_region
          %p422 = scmp.lt.s32.totalorder %s12, 1
          %s423 = scalar_select %p422, %s12, 1
          %s424 = smul.addr %s423, 8
          %s425 = scalar_lea.vmem %s2, %s424
        $region102: #{_lambda_.1} parent=15 // pred_fallthru
          _
      $region16: #{_lambda_.1} parent=5 // pred_fallthru
        _
      %p426 = scmp.le.s32.totalorder 1, %s12
      %p427 = scmp.lt.s32.totalorder %s12, 3
      %p428 = pnand %p426, %p427
      %p429 = pneg %p428
      // Predicated region
      $region103: #{_lambda_.1} parent=5 // pred_check
        _
      $region104: #{_lambda_.1} parent=5 // pred_check_branch
        %431 = sbr.rel (%p428) target = $region106
      $region105: #{_lambda_.1} parent=5 // pred_region
        %s432 = ssub.s32 %s12, 1
        %s433 = sand.u32 %s25, 1
        %s434 = sand.u32 %s25, 1
        %s435 = smul.addr %s434, 96
        %s436 = scalar_lea.vmem [#allocation2], %s435
        // Predicated region
        $region107: #{_lambda_.1} parent=105 // pred_check
          %p437 = pneg %p38
        $region108: #{_lambda_.1} parent=105 // pred_check_branch
          %439 = sbr.rel (%p437) target = $region110
        $region109: #{_lambda_.1} parent=105 // pred_region
          _
        $region110: #{_lambda_.1} parent=105 // pred_fallthru
          _
        %s440 = sand.u32 %s51, 1
        %s441 = sand.u32 %s51, 1
        %s442 = smul.addr %s441, 96
        %s443 = scalar_lea.vmem [#allocation3], %s442
        // Predicated region
        $region111: #{_lambda_.1} parent=105 // pred_check
          %p444 = pneg %p64
        $region112: #{_lambda_.1} parent=105 // pred_check_branch
          %446 = sbr.rel (%p444) target = $region114
        $region113: #{_lambda_.1} parent=105 // pred_region
          _
        $region114: #{_lambda_.1} parent=105 // pred_fallthru
          _
        %s447 = sand.u32 %s25, 1
        %s448 = sand.u32 %s25, 1
        %s449 = smul.addr %s448, 96
        %s450 = scalar_lea.vmem [#allocation2], %s449
        %p451 = pneg %p38
        %p452 = pneg %p35
        %s453 = sand.u32 %s51, 1
        %s454 = sand.u32 %s51, 1
        %s455 = smul.addr %s454, 96
        %s456 = scalar_lea.vmem [#allocation3], %s455
        %p457 = pneg %p64
        %p458 = pneg %p61
        %p459 = scmp.lt.s32.totalorder %s17, 1
        %s460 = scalar_select %p459, %s17, 1
        %s461 = smul.addr %s460, 8
        %s462 = scalar_lea.vmem %s2, %s461
        %p463 = pneg %p90
        %p464 = pneg %p87
        %p465 = pneg %p116
        %p466 = pneg %p113
        %s467 = sand.u32 %s103, 1
        %s468 = scalar_lea.sflag [#allocation5], %s467
        %s469 = sand.u32 %s103, 1
        %s470 = scalar_lea.vmem [#allocation4], %s469
        %p471 = scmp.lt.s32.totalorder %s17, 1
        %s472 = scalar_select %p471, %s17, 1
        %s473 = smul.addr %s472, 8
        %s474 = scalar_lea.vmem %s2, %s473
        %v475 = vld [vmem:[%s436] sm:$0xf]
        %v476 = vld [vmem:[%s436 + $0x4] sm:$0xf]
        %v477 = vld [vmem:[%s436 + $0x8] sm:$0xf]
        %v478 = vld [vmem:[%s436 + $0xc] sm:$0xf]
        %v479 = vld [vmem:[%s436 + $0x10] sm:$0xf]
        %v480 = vld [vmem:[%s436 + $0x14] sm:$0xf]
        %v481 = vld [vmem:[%s436 + $0x18] sm:$0xf]
        %v482 = vld [vmem:[%s436 + $0x1c] sm:$0xf]
        %v483 = vld [vmem:[%s436 + $0x20] sm:$0xf]
        %v484 = vld [vmem:[%s436 + $0x24] sm:$0xf]
        %v485 = vld [vmem:[%s436 + $0x28] sm:$0xf]
        %v486 = vld [vmem:[%s436 + $0x2c] sm:$0xf]
        %v487 = vld [vmem:[%s436 + $0x30] sm:$0xf]
        %v488 = vld [vmem:[%s436 + $0x34] sm:$0xf]
        %v489 = vld [vmem:[%s436 + $0x38] sm:$0xf]
        %v490 = vld [vmem:[%s436 + $0x3c] sm:$0xf]
        %v491 = vld [vmem:[%s436 + $0x40] sm:$0xf]
        %v492 = vld [vmem:[%s436 + $0x44] sm:$0xf]
        %v493 = vld [vmem:[%s436 + $0x48] sm:$0xf]
        %v494 = vld [vmem:[%s436 + $0x4c] sm:$0xf]
        %v495 = vld [vmem:[%s436 + $0x50] sm:$0xf]
        %v496 = vld [vmem:[%s436 + $0x54] sm:$0xf]
        %v497 = vld [vmem:[%s436 + $0x58] sm:$0xf]
        %v498 = vld [vmem:[%s436 + $0x5c] sm:$0xf]
        %v499 = vunpack.c.l.bf16 %v475
        %v500 = vunpack.c.l.bf16 %v476
        %v501 = vunpack.c.l.bf16 %v477
        %v502 = vunpack.c.l.bf16 %v478
        %v503 = vunpack.c.l.bf16 %v479
        %v504 = vunpack.c.l.bf16 %v480
        %v505 = vunpack.c.l.bf16 %v481
        %v506 = vunpack.c.l.bf16 %v482
        %v507 = vunpack.c.l.bf16 %v483
        %v508 = vunpack.c.l.bf16 %v484
        %v509 = vunpack.c.l.bf16 %v485
        %v510 = vunpack.c.l.bf16 %v486
        %v511 = vunpack.c.l.bf16 %v487
        %v512 = vunpack.c.l.bf16 %v488
        %v513 = vunpack.c.l.bf16 %v489
        %v514 = vunpack.c.l.bf16 %v490
        %v515 = vunpack.c.l.bf16 %v491
        %v516 = vunpack.c.l.bf16 %v492
        %v517 = vunpack.c.l.bf16 %v493
        %v518 = vunpack.c.l.bf16 %v494
        %v519 = vunpack.c.l.bf16 %v495
        %v520 = vunpack.c.l.bf16 %v496
        %v521 = vunpack.c.l.bf16 %v497
        %v522 = vunpack.c.l.bf16 %v498
        %v523 = vld [vmem:[%s443] sm:$0xf]
        %v524 = vld [vmem:[%s443 + $0x4] sm:$0xf]
        %v525 = vld [vmem:[%s443 + $0x8] sm:$0xf]
        %v526 = vld [vmem:[%s443 + $0xc] sm:$0xf]
        %v527 = vld [vmem:[%s443 + $0x10] sm:$0xf]
        %v528 = vld [vmem:[%s443 + $0x14] sm:$0xf]
        %v529 = vld [vmem:[%s443 + $0x18] sm:$0xf]
        %v530 = vld [vmem:[%s443 + $0x1c] sm:$0xf]
        %v531 = vld [vmem:[%s443 + $0x20] sm:$0xf]
        %v532 = vld [vmem:[%s443 + $0x24] sm:$0xf]
        %v533 = vld [vmem:[%s443 + $0x28] sm:$0xf]
        %v534 = vld [vmem:[%s443 + $0x2c] sm:$0xf]
        %v535 = vld [vmem:[%s443 + $0x30] sm:$0xf]
        %v536 = vld [vmem:[%s443 + $0x34] sm:$0xf]
        %v537 = vld [vmem:[%s443 + $0x38] sm:$0xf]
        %v538 = vld [vmem:[%s443 + $0x3c] sm:$0xf]
        %v539 = vld [vmem:[%s443 + $0x40] sm:$0xf]
        %v540 = vld [vmem:[%s443 + $0x44] sm:$0xf]
        %v541 = vld [vmem:[%s443 + $0x48] sm:$0xf]
        %v542 = vld [vmem:[%s443 + $0x4c] sm:$0xf]
        %v543 = vld [vmem:[%s443 + $0x50] sm:$0xf]
        %v544 = vld [vmem:[%s443 + $0x54] sm:$0xf]
        %v545 = vld [vmem:[%s443 + $0x58] sm:$0xf]
        %v546 = vld [vmem:[%s443 + $0x5c] sm:$0xf]
        %v547 = vunpack.c.l.bf16 %v523
        %v548 = vunpack.c.l.bf16 %v524
        %v549 = vunpack.c.l.bf16 %v525
        %v550 = vunpack.c.l.bf16 %v526
        %v551 = vunpack.c.l.bf16 %v527
        %v552 = vunpack.c.l.bf16 %v528
        %v553 = vunpack.c.l.bf16 %v529
        %v554 = vunpack.c.l.bf16 %v530
        %v555 = vunpack.c.l.bf16 %v531
        %v556 = vunpack.c.l.bf16 %v532
        %v557 = vunpack.c.l.bf16 %v533
        %v558 = vunpack.c.l.bf16 %v534
        %v559 = vunpack.c.l.bf16 %v535
        %v560 = vunpack.c.l.bf16 %v536
        %v561 = vunpack.c.l.bf16 %v537
        %v562 = vunpack.c.l.bf16 %v538
        %v563 = vunpack.c.l.bf16 %v539
        %v564 = vunpack.c.l.bf16 %v540
        %v565 = vunpack.c.l.bf16 %v541
        %v566 = vunpack.c.l.bf16 %v542
        %v567 = vunpack.c.l.bf16 %v543
        %v568 = vunpack.c.l.bf16 %v544
        %v569 = vunpack.c.l.bf16 %v545
        %v570 = vunpack.c.l.bf16 %v546
        %v571 = vmul.f32 %v499, %v547
        %v572 = vmul.f32 %v500, %v548
        %v573 = vmul.f32 %v501, %v549
        %v574 = vmul.f32 %v502, %v550
        %v575 = vmul.f32 %v503, %v551
        %v576 = vmul.f32 %v504, %v552
        %v577 = vmul.f32 %v505, %v553
        %v578 = vmul.f32 %v506, %v554
        %v579 = vmul.f32 %v507, %v555
        %v580 = vmul.f32 %v508, %v556
        %v581 = vmul.f32 %v509, %v557
        %v582 = vmul.f32 %v510, %v558
        %v583 = vmul.f32 %v511, %v559
        %v584 = vmul.f32 %v512, %v560
        %v585 = vmul.f32 %v513, %v561
        %v586 = vmul.f32 %v514, %v562
        %v587 = vmul.f32 %v515, %v563
        %v588 = vmul.f32 %v516, %v564
        %v589 = vmul.f32 %v517, %v565
        %v590 = vmul.f32 %v518, %v566
        %v591 = vmul.f32 %v519, %v567
        %v592 = vmul.f32 %v520, %v568
        %v593 = vmul.f32 %v521, %v569
        %v594 = vmul.f32 %v522, %v570
        %v595 = vadd.f32 %v571, %v572
        %v596 = vadd.f32 %v595, %v573
        %v597 = vadd.f32 %v596, %v574
        %v598 = vadd.f32 %v597, %v575
        %v599 = vadd.f32 %v598, %v576
        %v600 = vadd.f32 %v599, %v577
        %v601 = vadd.f32 %v600, %v578
        %v602 = vadd.f32 %v601, %v579
        %v603 = vadd.f32 %v602, %v580
        %v604 = vadd.f32 %v603, %v581
        %v605 = vadd.f32 %v604, %v582
        %v606 = vadd.f32 %v605, %v583
        %v607 = vadd.f32 %v606, %v584
        %v608 = vadd.f32 %v607, %v585
        %v609 = vadd.f32 %v608, %v586
        %v610 = vadd.f32 %v609, %v587
        %v611 = vadd.f32 %v610, %v588
        %v612 = vadd.f32 %v611, %v589
        %v613 = vadd.f32 %v612, %v590
        %v614 = vadd.f32 %v613, %v591
        %v615 = vadd.f32 %v614, %v592
        %v616 = vadd.f32 %v615, %v593
        %v617 = vadd.f32 %v616, %v594
        %v618 = vrot.slane %v617, 4
        %v619 = vadd.f32 %v617, %v618
        %v620 = vrot.slane %v619, 2
        %v621 = vadd.f32 %v619, %v620
        %v622 = vrot.slane %v621, 1
        %v623 = vadd.f32 %v621, %v622
        %v624 = vld [vmem:[%s474] sm:$0x1f]
        %vm625 = vcmask 1044480
        %v626 = vsel %vm625, %v624, 0.0
        %v627 = vrot.slane %v626, 4
        %v628 = vadd.f32 %v626, %v627
        %v629 = vrot.slane %v628, 2
        %v630 = vadd.f32 %v628, %v629
        %v631 = vrot.slane %v630, 1
        %v632 = vadd.f32 %v630, %v631
        %v633 = vadd.f32 %v623, %v632
        %v634 = vxor.u32 %v633, 2147483648
        %v635 = vmul.f32 %v634, 1.442695
        %v636 = vpow.pop %v635
        %v637 = vadd.f32 %v636, 1.0
        %v638 = vrcp.pop %v637
        %v639 = vmul.f32 %v637, %v638
        %v640 = vsub.f32 1.0, %v639
        %v641 = vmul.f32 %v638, %v640
        %v642 = vadd.f32 %v638, %v641
        %vm643 = vweird.f32 %v637
        %vm644 = vweird.f32 %v638
        %vm645 = vmor %vm643, %vm644
        %v646 = vsel %vm645, %v638, %v642
        %v647 = vand.u32 2147483647, %v637
        %vm648 = vcmp.eq.f32.partialorder %v647, 8.507059e+37
        %v649 = vand.u32 %v637, 2147483648
        %v650 = vor.u32 1.1754944e-38, %v649
        %v651 = vsel %vm648, %v650, %v646
        %v652 = vmul.f32 1.0, %v651
        %653 = vst [vmem:[%s470] sm:$0x1] %v652
        %s654 = sand.u32 %s103, 1
        %s655 = scalar_lea.sflag [#allocation5], %s654
        %s656 = sand.u32 %s103, 1
        %s657 = scalar_lea.vmem [#allocation4], %s656
        // Predicated region
        $region115: #{_lambda_.1} parent=105 // pred_check
          %p658 = pneg %p113
        $region116: #{_lambda_.1} parent=105 // pred_check_branch
          %660 = sbr.rel (%p658) target = $region118
        $region117: #{_lambda_.1} parent=105 // pred_region
          %662 = vsyncadd %s655, 0
          %s663 = scalar_lea.hbm %s3, %s17
          %s665 = sshll.u32 %s657, 4
          %s666 = int_to_ptr.vmem [resolvable:$true] %s665
          %s667 = sshll.u32 %s663, 4
          %s668 = int_to_ptr.hbm [resolvable:$true] %s667
          %670 = dma.vmem_to_hbm [thread:$0]  %s666, 16, %s668, %s655
        $region118: #{_lambda_.1} parent=105 // pred_fallthru
          _
      $region106: #{_lambda_.1} parent=5 // pred_fallthru
        _
      %p671 = scmp.le.s32.totalorder 2, %s12
      // Predicated region
      $region119: #{_lambda_.1} parent=5 // pred_check
        %p672 = pneg %p671
      $region120: #{_lambda_.1} parent=5 // pred_check_branch
        %674 = sbr.rel (%p672) target = $region122
      $region121: #{_lambda_.1} parent=5 // pred_region
        %s675 = ssub.s32 %s12, 2
        // Predicated region
        $region123: #{_lambda_.1} parent=121 // pred_check
          %p676 = pneg %p119
        $region124: #{_lambda_.1} parent=121 // pred_check_branch
          %678 = sbr.rel (%p676) target = $region126
        $region125: #{_lambda_.1} parent=121 // pred_region
          %s679 = sand.u32 %s104, 1
          %s680 = scalar_lea.sflag [#allocation5], %s679
          %s681 = sand.u32 %s104, 1
          %s682 = scalar_lea.vmem [#allocation4], %s681
          %684 = dma.done %s680, 16
        $region126: #{_lambda_.1} parent=121 // pred_fallthru
          _
      $region122: #{_lambda_.1} parent=5 // pred_fallthru
        _
    $region6: #{_lambda_.1} parent=1 // loop_footer
      %s16 = sadd.s32 1, %s12
    $region7: #{_lambda_.1} parent=1 // loop_footer_branch
      %11 = sbr.rel target = $region3
    $region8: #{_lambda_.1} parent=1 // loop_exit
      _
    %685 = vsyncpa [#allocation5], 1
    %s686 = scalar_lea.sflag [#allocation5], 1
    %687 = vsyncpa %s686, 1

</llo_original>
